<compile_context>
chip_gen: v6e
topology: v6e:2x2x1
jax: 0.10.0
libtpu: 0.0.40
codegen_flags: <defaults>
</compile_context>

<pallas_src>
import functools

import jax
import jax.numpy as jnp
from jax import lax
from jax.experimental import pallas as pl
from jax.experimental.pallas import tpu as pltpu

_LANES = 1024          # lane-dense last dim (multiple of 128)
_TM_TARGET = 1024      # max rows per block -> 1024*1024*4 B = 4 MiB per f32 stream
_MIN_GRID = 4          # keep >= this many grid steps when possible (v7x dual-TC)
_PAD_FILL = -1e30      # sigmoid(fill + 3) == 0.0 exactly -> padding is inert


def _soft_concrete_kernel(x_ref, hard_ref, p_ref, psum_ref, *,
                          loc_bias: float, tm: int, m_rows: int, mask_rows: bool):
    x = x_ref[...].astype(jnp.float32) + loc_bias      # compute in f32 (v5e-safe)
    # Single-EUP sigmoid: 0.5*tanh(0.5*x)+0.5 (one transcendental per element).
    p = 0.5 * jnp.tanh(0.5 * x) + 0.5                  # in (0,1) => clip is a no-op

    # Straight-through forward value: sigmoid(x) > 0.5  <=>  x > 0 (pre-sigmoid test).
    hard_ref[...] = (x > 0.0).astype(hard_ref.dtype)
    p_ref[...] = p.astype(p_ref.dtype)

    # Partial-sum path.  Only a ragged last block needs row masking: its OOB rows
    # hold stale VMEM contents, so zero them before summing (output writes of those
    # rows are dropped by Pallas automatically).
    if mask_rows:
        valid = m_rows - pl.program_id(0) * tm
        row = lax.broadcasted_iota(jnp.int32, (tm, 1), 0)
        p_sum = jnp.where(row < valid, p, 0.0)
    else:
        p_sum = p

    # Sublane-band fold (tm, W) -> (8, W): tile-aligned static slices, pure VPU.
    # Two accumulators keep the dependent-add chain short when tm is large.
    bands = [p_sum[r0:r0 + 8, :] for r0 in range(0, tm, 8)]
    acc0 = bands[0]
    acc1 = bands[1] if len(bands) > 1 else None
    for idx in range(2, len(bands), 2):
        acc0 = acc0 + bands[idx]
        if idx + 1 < len(bands):
            acc1 = acc1 + bands[idx + 1]
    acc = acc0 if acc1 is None else acc0 + acc1

    # Lane-group fold (8, W) -> (8, 128): 128-aligned static slices, still lane-dense,
    # shrinks the psum writeback (and the follow-up XLA reduce) by 8x.
    w = acc.shape[1]
    ps = acc[:, 0:128]
    for c0 in range(128, w, 128):
        ps = ps + acc[:, c0:c0 + 128]
    psum_ref[...] = ps


def soft_concrete(x, *, loc_bias: float = 3.0):
    """Returns (clipped_s_, penalty, clipped_s, penalty_not_sum) like the torch module.

    Note: clipped_s and penalty_not_sum are the SAME JAX array (clip(sigmoid(.),0,1)
    is the identity); the torch module returns two distinct-but-equal tensors.
    """
    orig_shape = x.shape
    dtype = x.dtype
    n = x.size
    w = _LANES

    m = pl.cdiv(n, w)                                   # rows needed
    m_rows = m if m >= 8 else 8                         # tiny-input guard (< 8*W elems)

    # Block rows: as large as possible (big DMAs, low per-step overhead), but keep
    # at least _MIN_GRID grid steps so both v7x TensorCores are used.
    tm_cap = max(8, ((pl.cdiv(m_rows, _MIN_GRID) + 7) // 8) * 8)
    tm = min(_TM_TARGET, tm_cap)
    grid = (pl.cdiv(m_rows, tm),)
    mask_rows = (m_rows % tm) != 0                      # ragged last block only

    # FAST PATH: no jnp.pad / no output slice when n is already a multiple of W
    # (and m >= 8).  Otherwise pad the flat tail with the inert fill value.
    n_slab = m_rows * w
    x_flat = x.reshape(-1)
    if n_slab != n:
        x_flat = jnp.pad(x_flat, (0, n_slab - n), constant_values=_PAD_FILL)
    x2d = x_flat.reshape(m_rows, w)

    kernel = functools.partial(_soft_concrete_kernel, loc_bias=float(loc_bias),
                               tm=tm, m_rows=m_rows, mask_rows=mask_rows)

    tile_spec = pl.BlockSpec((tm, w), lambda i: (i, 0))
    psum_spec = pl.BlockSpec((8, 128), lambda i: (i, 0))

    out_shapes = (
        jax.ShapeDtypeStruct((m_rows, w), dtype),               # hard  (clipped_s_)
        jax.ShapeDtypeStruct((m_rows, w), dtype),               # p     (penalty_not_sum / clipped_s)
        jax.ShapeDtypeStruct((grid[0] * 8, 128), jnp.float32),  # per-step partial sums
    )

    # Explicit VMEM budget: double-buffered (input + 2 outputs) blocks + headroom.
    # ~32 MiB at TM=1024/f32 -> fits every generation (v5e default scoped 16 MiB
    # would not, so raising the limit here is required; v7x physical is 64 MiB).
    itemsize = jnp.dtype(dtype).itemsize
    per_step = 3 * tm * w * itemsize + 8 * 128 * 4
    vmem_limit = max(16 << 20, min(2 * per_step + (8 << 20), 48 << 20))

    hard2d, p2d, psums = pl.pallas_call(
        kernel,
        grid=grid,
        in_specs=[tile_spec],
        out_specs=(tile_spec, tile_spec, psum_spec),
        out_shape=out_shapes,
        compiler_params=pltpu.CompilerParams(
            dimension_semantics=("parallel",),   # no cross-step deps -> both v7x TCs usable
            vmem_limit_bytes=int(vmem_limit)),
    )(x2d)

    def unslab(a2d):
        flat = a2d.reshape(-1)
        if flat.shape[0] != n:               # only on the ragged / tiny-input path
            flat = flat[:n]
        return flat.reshape(orig_shape)

    clipped_s_ = unslab(hard2d)
    penalty_not_sum = unslab(p2d)
    clipped_s = penalty_not_sum              # clip(sigmoid(.), 0, 1) is the identity
    penalty = (jnp.sum(psums) / jnp.float32(n)).astype(dtype)
    return clipped_s_, penalty, clipped_s, penalty_not_sum


def _check(x, atol_elem=1e-5, atol_mean=1e-6):
    clipped_s_, penalty, clipped_s, penalty_not_sum = jax.block_until_ready(
        soft_concrete(x))
    p_ref = jax.nn.sigmoid(x + 3.0)
    clipped_ref = jnp.clip(p_ref, 0.0, 1.0)
    hard_ref = (clipped_ref > 0.5).astype(jnp.float32)
    mean_ref = jnp.mean(p_ref)
    assert jnp.allclose(penalty_not_sum, p_ref, atol=atol_elem)
    assert jnp.allclose(clipped_s, clipped_ref, atol=atol_elem)
    assert jnp.allclose(clipped_s_, hard_ref)
    assert jnp.allclose(penalty, mean_ref, atol=atol_mean)


if __name__ == "__main__":
    key = jax.random.PRNGKey(0)
    k0, k1 = jax.random.split(key)

    # Primary small example (NCHW, as a typical caller of the module would use).
    x_small = jax.random.normal(k0, (2, 4, 16, 16), dtype=jnp.float32)
    _check(x_small)

    # Secondary mid-size check: exercises the aligned fast path (no pad / no slice),
    # a multi-step grid, and the in-kernel ragged-last-block psum masking.
    x_mid = jax.random.normal(k1, (4, 25, 32, 32), dtype=jnp.float32)
    _check(x_mid)

    print("KERNEL_OK")
</pallas_src>

<mosaic_0001>
module attributes {stable_mosaic.version = 11 : i64} {
  func.func @_soft_concrete_kernel(%arg0: i32, %arg1: memref<8x1024xf32, #tpu.memory_space<vmem>>, %arg2: memref<8x1024xf32, #tpu.memory_space<vmem>>, %arg3: memref<8x1024xf32, #tpu.memory_space<vmem>>, %arg4: memref<8x128xf32, #tpu.memory_space<vmem>>) attributes {dimension_semantics = [#tpu.dimension_semantics<parallel>], iteration_bounds = array<i64: 1>, scalar_prefetch = 0 : i64, scratch_operands = 0 : i64, tpu.core_type = #tpu.core_type<tc>, window_params = [{transform_indices = @transform_0, window_bounds = array<i64: 8, 1024>}, {transform_indices = @transform_1, window_bounds = array<i64: 8, 1024>}, {transform_indices = @transform_2, window_bounds = array<i64: 8, 1024>}, {transform_indices = @transform_3, window_bounds = array<i64: 8, 128>}]} {
    %c0 = arith.constant 0 : index
    %c0_0 = arith.constant 0 : index
    %0 = vector.load %arg1[%c0, %c0_0] : memref<8x1024xf32, #tpu.memory_space<vmem>>, vector<8x1024xf32>
    %cst = arith.constant 3.000000e+00 : f32
    %1 = vector.broadcast %cst : f32 to vector<8x1024xf32>
    %2 = arith.addf %0, %1 : vector<8x1024xf32>
    %cst_1 = arith.constant 5.000000e-01 : f32
    %3 = vector.broadcast %cst_1 : f32 to vector<8x1024xf32>
    %4 = arith.mulf %3, %2 : vector<8x1024xf32>
    %5 = math.tanh %4 : vector<8x1024xf32>
    %cst_2 = arith.constant 5.000000e-01 : f32
    %6 = vector.broadcast %cst_2 : f32 to vector<8x1024xf32>
    %7 = arith.mulf %6, %5 : vector<8x1024xf32>
    %cst_3 = arith.constant 5.000000e-01 : f32
    %8 = vector.broadcast %cst_3 : f32 to vector<8x1024xf32>
    %9 = arith.addf %7, %8 : vector<8x1024xf32>
    %cst_4 = arith.constant 0.000000e+00 : f32
    %10 = vector.broadcast %cst_4 : f32 to vector<8x1024xf32>
    %11 = arith.cmpf ogt, %2, %10 : vector<8x1024xf32>
    %12 = arith.extui %11 : vector<8x1024xi1> to vector<8x1024xi32>
    %13 = arith.sitofp %12 : vector<8x1024xi32> to vector<8x1024xf32>
    %c0_5 = arith.constant 0 : index
    %c0_6 = arith.constant 0 : index
    %14 = vector.load %arg2[%c0_5, %c0_6] : memref<8x1024xf32, #tpu.memory_space<vmem>>, vector<8x1024xf32>
    tpu.vector_store %arg2[%c0_5, %c0_6], %13 {strides = array<i32>} : memref<8x1024xf32, #tpu.memory_space<vmem>>, vector<8x1024xf32>,
    %c0_7 = arith.constant 0 : index
    %c0_8 = arith.constant 0 : index
    %15 = vector.load %arg3[%c0_7, %c0_8] : memref<8x1024xf32, #tpu.memory_space<vmem>>, vector<8x1024xf32>
    tpu.vector_store %arg3[%c0_7, %c0_8], %9 {strides = array<i32>} : memref<8x1024xf32, #tpu.memory_space<vmem>>, vector<8x1024xf32>,
    %16 = vector.extract_strided_slice %9 {offsets = [0, 0], sizes = [8, 128], strides = [1, 1]} : vector<8x1024xf32> to vector<8x128xf32>
    %17 = vector.extract_strided_slice %9 {offsets = [0, 128], sizes = [8, 128], strides = [1, 1]} : vector<8x1024xf32> to vector<8x128xf32>
    %18 = arith.addf %16, %17 : vector<8x128xf32>
    %19 = vector.extract_strided_slice %9 {offsets = [0, 256], sizes = [8, 128], strides = [1, 1]} : vector<8x1024xf32> to vector<8x128xf32>
    %20 = arith.addf %18, %19 : vector<8x128xf32>
    %21 = vector.extract_strided_slice %9 {offsets = [0, 384], sizes = [8, 128], strides = [1, 1]} : vector<8x1024xf32> to vector<8x128xf32>
    %22 = arith.addf %20, %21 : vector<8x128xf32>
    %23 = vector.extract_strided_slice %9 {offsets = [0, 512], sizes = [8, 128], strides = [1, 1]} : vector<8x1024xf32> to vector<8x128xf32>
    %24 = arith.addf %22, %23 : vector<8x128xf32>
    %25 = vector.extract_strided_slice %9 {offsets = [0, 640], sizes = [8, 128], strides = [1, 1]} : vector<8x1024xf32> to vector<8x128xf32>
    %26 = arith.addf %24, %25 : vector<8x128xf32>
    %27 = vector.extract_strided_slice %9 {offsets = [0, 768], sizes = [8, 128], strides = [1, 1]} : vector<8x1024xf32> to vector<8x128xf32>
    %28 = arith.addf %26, %27 : vector<8x128xf32>
    %29 = vector.extract_strided_slice %9 {offsets = [0, 896], sizes = [8, 128], strides = [1, 1]} : vector<8x1024xf32> to vector<8x128xf32>
    %30 = arith.addf %28, %29 : vector<8x128xf32>
    %c0_9 = arith.constant 0 : index
    %c0_10 = arith.constant 0 : index
    %31 = vector.load %arg4[%c0_9, %c0_10] : memref<8x128xf32, #tpu.memory_space<vmem>>, vector<8x128xf32>
    tpu.vector_store %arg4[%c0_9, %c0_10], %30 {strides = array<i32>} : memref<8x128xf32, #tpu.memory_space<vmem>>, vector<8x128xf32>,
    return
  }
  func.func @transform_0(%arg0: i32) -> (i32, i32) {
    %c0_i32 = arith.constant 0 : i32
    %c0_i32_0 = arith.constant 0 : i32
    return %arg0, %c0_i32 : i32, i32
  }
  func.func @transform_1(%arg0: i32) -> (i32, i32) {
    %c0_i32 = arith.constant 0 : i32
    %c0_i32_0 = arith.constant 0 : i32
    return %arg0, %c0_i32 : i32, i32
  }
  func.func @transform_2(%arg0: i32) -> (i32, i32) {
    %c0_i32 = arith.constant 0 : i32
    %c0_i32_0 = arith.constant 0 : i32
    return %arg0, %c0_i32 : i32, i32
  }
  func.func @transform_3(%arg0: i32) -> (i32, i32) {
    %c0_i32 = arith.constant 0 : i32
    %c0_i32_0 = arith.constant 0 : i32
    return %arg0, %c0_i32 : i32, i32
  }
}

</mosaic_0001>

<llo_original>
// kernel: tpu_custom_call.1
$region0: #{tpu_custom_call.1}
  #allocation0 [shape = 'u32[]', space=smem, size = 0x4, offset = 0x4, fixed_abs, tag = 'smem constant byte address 0x4 - core index']
  #allocation1 [shape = 'u32[144,128]{1,0:T(1,128)}', space=vmem, size = 0x12000, scoped, tag = 'internal scratch']
  %s0 = inlined_call_operand.hbm [shape: f32[8,1024], index: 0, kind: input, shape index: {}]
  %s1 = inlined_call_operand.hbm [shape: f32[8,1024], index: 1, kind: output, shape index: {0}]
  %s2 = inlined_call_operand.hbm [shape: f32[8,1024], index: 2, kind: output, shape index: {1}]
  %s3 = inlined_call_operand.hbm [shape: f32[8,128], index: 3, kind: output, shape index: {2}]
  %4 = xla_tuple %s1, %s2, %s3
  %s5 = sld [smem:[#allocation0]]
  $region34: #{tpu_custom_call.1} parent=0
    _
  %s7 = ssub.s32 1, %s5
  %s8 = scalar_select 0, %s7, %s5
  $region1: #{tpu_custom_call.1} parent=0
    #allocation2 [shape = 'u8[32768]{0}', space=vmem, size = 0x8000, scoped, tag = 'input window, operand 0, single buffered']
    #allocation3 [shape = 's32[1]{0}', space=sflag, size = 0x4, scoped, tag = 'scoped memory for tpu_custom_call.1']
    #allocation4 [shape = 's32[1]{0}', space=sflag, size = 0x4, scoped, tag = 'scoped memory for tpu_custom_call.1']
    #allocation5 [shape = 'u8[32768]{0}', space=vmem, size = 0x8000, scoped, tag = 'output window, operand 0, single buffered']
    #allocation6 [shape = 'u8[32768]{0}', space=vmem, size = 0x8000, scoped, tag = 'output window, operand 1, single buffered']
    #allocation7 [shape = 's32[1]{0}', space=sflag, size = 0x4, scoped, tag = 'scoped memory for tpu_custom_call.1']
    #allocation8 [shape = 'u8[4096]{0}', space=vmem, size = 0x1000, scoped, tag = 'output window, operand 2, single buffered']
    %9 = vsyncpa [#allocation3], 0
    %10 = vsyncpa [#allocation4], 0
    %11 = vsyncpa [#allocation7], 0
    // Predicated region
    $region2: #{tpu_custom_call.1} parent=1 // pred_check
      _
    $region3: #{tpu_custom_call.1} parent=1 // pred_check_branch
      %13 = sbr.rel (0) target = $region5
    $region4: #{tpu_custom_call.1} parent=1 // pred_region
      %s15 = ssub.s32 1024, 1024
      %16 = vsyncadd [#allocation3], %s15
      %s18 = sshll.u32 [#allocation2], 4
      %s19 = int_to_ptr.vmem [resolvable:$true] %s18
      %21 = dma.hbm_to_vmem [thread:$0]  %s0, 1024, %s19, [#allocation3]
    $region5: #{tpu_custom_call.1} parent=1 // pred_fallthru
      _
    // Predicated region
    $region6: #{tpu_custom_call.1} parent=1 // pred_check
      _
    $region7: #{tpu_custom_call.1} parent=1 // pred_check_branch
      %23 = sbr.rel (0) target = $region9
    $region8: #{tpu_custom_call.1} parent=1 // pred_region
      %24 = dma.done [#allocation3], 1024
    $region9: #{tpu_custom_call.1} parent=1 // pred_fallthru
      _
    %v25 = vld [vmem:[#allocation2] sm:$0xff]
    %v26 = vld [vmem:[#allocation2 + $0x8] sm:$0xff]
    %v27 = vld [vmem:[#allocation2 + $0x10] sm:$0xff]
    %v28 = vld [vmem:[#allocation2 + $0x18] sm:$0xff]
    %v29 = vld [vmem:[#allocation2 + $0x20] sm:$0xff]
    %v30 = vld [vmem:[#allocation2 + $0x28] sm:$0xff]
    %v31 = vld [vmem:[#allocation2 + $0x30] sm:$0xff]
    %v32 = vld [vmem:[#allocation2 + $0x38] sm:$0xff]
    %v33 = vadd.f32 %v25, 3.0
    %v34 = vadd.f32 %v26, 3.0
    %v35 = vadd.f32 %v27, 3.0
    %v36 = vadd.f32 %v28, 3.0
    %v37 = vadd.f32 %v29, 3.0
    %v38 = vadd.f32 %v30, 3.0
    %v39 = vadd.f32 %v31, 3.0
    %v40 = vadd.f32 %v32, 3.0
    %v41 = vmul.f32 %v33, 0.5
    %v42 = vmul.f32 %v34, 0.5
    %v43 = vmul.f32 %v35, 0.5
    %v44 = vmul.f32 %v36, 0.5
    %v45 = vmul.f32 %v37, 0.5
    %v46 = vmul.f32 %v38, 0.5
    %v47 = vmul.f32 %v39, 0.5
    %v48 = vmul.f32 %v40, 0.5
    %v49 = vtanh.pop %v41
    %v50 = vtanh.pop %v42
    %v51 = vtanh.pop %v43
    %v52 = vtanh.pop %v44
    %v53 = vtanh.pop %v45
    %v54 = vtanh.pop %v46
    %v55 = vtanh.pop %v47
    %v56 = vtanh.pop %v48
    %v57 = vmul.f32 %v49, 0.5
    %v58 = vmul.f32 %v50, 0.5
    %v59 = vmul.f32 %v51, 0.5
    %v60 = vmul.f32 %v52, 0.5
    %v61 = vmul.f32 %v53, 0.5
    %v62 = vmul.f32 %v54, 0.5
    %v63 = vmul.f32 %v55, 0.5
    %v64 = vmul.f32 %v56, 0.5
    %v65 = vadd.f32 %v57, 0.5
    %v66 = vadd.f32 %v58, 0.5
    %v67 = vadd.f32 %v59, 0.5
    %v68 = vadd.f32 %v60, 0.5
    %v69 = vadd.f32 %v61, 0.5
    %v70 = vadd.f32 %v62, 0.5
    %v71 = vadd.f32 %v63, 0.5
    %v72 = vadd.f32 %v64, 0.5
    %vm73 = vcmp.gt.f32.partialorder %v33, 0.0
    %vm74 = vcmp.gt.f32.partialorder %v34, 0.0
    %vm75 = vcmp.gt.f32.partialorder %v35, 0.0
    %vm76 = vcmp.gt.f32.partialorder %v36, 0.0
    %vm77 = vcmp.gt.f32.partialorder %v37, 0.0
    %vm78 = vcmp.gt.f32.partialorder %v38, 0.0
    %vm79 = vcmp.gt.f32.partialorder %v39, 0.0
    %vm80 = vcmp.gt.f32.partialorder %v40, 0.0
    %v81 = vsel %vm73, 1, 0
    %v82 = vsel %vm74, 1, 0
    %v83 = vsel %vm75, 1, 0
    %v84 = vsel %vm76, 1, 0
    %v85 = vsel %vm77, 1, 0
    %v86 = vsel %vm78, 1, 0
    %v87 = vsel %vm79, 1, 0
    %v88 = vsel %vm80, 1, 0
    %v89 = vcvt.s32.f32 %v81
    %v90 = vcvt.s32.f32 %v82
    %v91 = vcvt.s32.f32 %v83
    %v92 = vcvt.s32.f32 %v84
    %v93 = vcvt.s32.f32 %v85
    %v94 = vcvt.s32.f32 %v86
    %v95 = vcvt.s32.f32 %v87
    %v96 = vcvt.s32.f32 %v88
    %97 = vst [vmem:[#allocation5] sm:$0xff] %v89
    %98 = vst [vmem:[#allocation5 + $0x8] sm:$0xff] %v90
    %99 = vst [vmem:[#allocation5 + $0x10] sm:$0xff] %v91
    %100 = vst [vmem:[#allocation5 + $0x18] sm:$0xff] %v92
    %101 = vst [vmem:[#allocation5 + $0x20] sm:$0xff] %v93
    %102 = vst [vmem:[#allocation5 + $0x28] sm:$0xff] %v94
    %103 = vst [vmem:[#allocation5 + $0x30] sm:$0xff] %v95
    %104 = vst [vmem:[#allocation5 + $0x38] sm:$0xff] %v96
    %105 = vst [vmem:[#allocation6] sm:$0xff] %v65
    %106 = vst [vmem:[#allocation6 + $0x8] sm:$0xff] %v66
    %107 = vst [vmem:[#allocation6 + $0x10] sm:$0xff] %v67
    %108 = vst [vmem:[#allocation6 + $0x18] sm:$0xff] %v68
    %109 = vst [vmem:[#allocation6 + $0x20] sm:$0xff] %v69
    %110 = vst [vmem:[#allocation6 + $0x28] sm:$0xff] %v70
    %111 = vst [vmem:[#allocation6 + $0x30] sm:$0xff] %v71
    %112 = vst [vmem:[#allocation6 + $0x38] sm:$0xff] %v72
    %v113 = vadd.f32 %v65, %v66
    %v114 = vadd.f32 %v113, %v67
    %v115 = vadd.f32 %v114, %v68
    %v116 = vadd.f32 %v115, %v69
    %v117 = vadd.f32 %v116, %v70
    %v118 = vadd.f32 %v117, %v71
    %v119 = vadd.f32 %v118, %v72
    %120 = vst [vmem:[#allocation8] sm:$0xff] %v119
    // Predicated region
    $region10: #{tpu_custom_call.1} parent=1 // pred_check
      _
    $region11: #{tpu_custom_call.1} parent=1 // pred_check_branch
      %122 = sbr.rel (0) target = $region13
    $region12: #{tpu_custom_call.1} parent=1 // pred_region
      %s124 = ssub.s32 1024, 1024
      %125 = vsyncadd [#allocation4], %s124
      %s127 = sshll.u32 [#allocation5], 4
      %s128 = int_to_ptr.vmem [resolvable:$true] %s127
      %130 = dma.vmem_to_hbm [thread:$0]  %s128, 1024, %s1, [#allocation4]
    $region13: #{tpu_custom_call.1} parent=1 // pred_fallthru
      _
    // Predicated region
    $region14: #{tpu_custom_call.1} parent=1 // pred_check
      _
    $region15: #{tpu_custom_call.1} parent=1 // pred_check_branch
      %132 = sbr.rel (0) target = $region17
    $region16: #{tpu_custom_call.1} parent=1 // pred_region
      %s134 = ssub.s32 1024, 1024
      %135 = vsyncadd [#allocation7], %s134
      %s137 = sshll.u32 [#allocation6], 4
      %s138 = int_to_ptr.vmem [resolvable:$true] %s137
      %140 = dma.vmem_to_hbm [thread:$0]  %s138, 1024, %s2, [#allocation7]
    $region17: #{tpu_custom_call.1} parent=1 // pred_fallthru
      _
    // Predicated region
    $region18: #{tpu_custom_call.1} parent=1 // pred_check
      _
    $region19: #{tpu_custom_call.1} parent=1 // pred_check_branch
      %142 = sbr.rel (0) target = $region21
    $region20: #{tpu_custom_call.1} parent=1 // pred_region
      %s144 = ssub.s32 128, 128
      %145 = vsyncadd [#allocation7], %s144
      %s147 = sshll.u32 [#allocation8], 4
      %s148 = int_to_ptr.vmem [resolvable:$true] %s147
      %150 = dma.vmem_to_hbm [thread:$0]  %s148, 128, %s3, [#allocation7]
    $region21: #{tpu_custom_call.1} parent=1 // pred_fallthru
      _
    // Predicated region
    $region22: #{tpu_custom_call.1} parent=1 // pred_check
      _
    $region23: #{tpu_custom_call.1} parent=1 // pred_check_branch
      %152 = sbr.rel (0) target = $region25
    $region24: #{tpu_custom_call.1} parent=1 // pred_region
      %153 = dma.done [#allocation4], 1024
    $region25: #{tpu_custom_call.1} parent=1 // pred_fallthru
      _
    // Predicated region
    $region26: #{tpu_custom_call.1} parent=1 // pred_check
      _
    $region27: #{tpu_custom_call.1} parent=1 // pred_check_branch
      %155 = sbr.rel (0) target = $region29
    $region28: #{tpu_custom_call.1} parent=1 // pred_region
      %156 = dma.done [#allocation7], 1024
    $region29: #{tpu_custom_call.1} parent=1 // pred_fallthru
      _
    // Predicated region
    $region30: #{tpu_custom_call.1} parent=1 // pred_check
      _
    $region31: #{tpu_custom_call.1} parent=1 // pred_check_branch
      %158 = sbr.rel (0) target = $region33
    $region32: #{tpu_custom_call.1} parent=1 // pred_region
      %159 = dma.done [#allocation7], 128
    $region33: #{tpu_custom_call.1} parent=1 // pred_fallthru
      _
    %160 = vsyncpa [#allocation3], 1
    %161 = vsyncpa [#allocation4], 1
    %162 = vsyncpa [#allocation7], 1

</llo_original>
